<compile_context>
chip_gen: v5e
topology: v5e:2x2
jax: 0.10.0
libtpu: 0.0.40
codegen_flags: <defaults>
</compile_context>

<pallas_src>
import functools

import jax
import jax.numpy as jnp
from jax.experimental import pallas as pl
from jax.experimental.pallas import tpu as pltpu

LN_EPS = 1e-12


def _round_up(x, m):
    return ((x + m - 1) // m) * m


def _layer_norm_rows(y, gamma, beta):
    """Single-pass LayerNorm over the last axis (E[x^2] - mean^2)."""
    h = y.shape[-1]
    inv_h = jnp.float32(1.0 / h)
    s1 = jnp.sum(y, axis=-1, keepdims=True)
    s2 = jnp.sum(y * y, axis=-1, keepdims=True)
    mean = s1 * inv_h
    var = jnp.maximum(s2 * inv_h - mean * mean, 0.0)
    return (y - mean) * jax.lax.rsqrt(var + jnp.float32(LN_EPS)) * gamma + beta


# ----------------------------- text kernel (manual DMA word-row gather) -----------------------------

def _text_embed_ln_kernel(ids_ref,                 # SMEM scalar prefetch: (n_pad,) int32
                          word_hbm,                # pl.ANY (HBM): (vocab, H)
                          extra_ref,               # VMEM tile: (T, H)  == tt rows + pos rows
                          gamma_ref, beta_ref,     # VMEM: (1, H)
                          o_ref,                   # VMEM out tile: (T, H)
                          wbuf, sem):              # scratch: VMEM (2*T, H), DMA sems (2*T,)
    T = wbuf.shape[0] // 2
    i = pl.program_id(0)
    nsteps = pl.num_programs(0)
    slot = i % 2

    def start_fetch(step, slot_base):
        base = step * T

        def body(t, carry):
            row = ids_ref[base + t]
            pltpu.make_async_copy(
                word_hbm.at[pl.ds(row, 1)],
                wbuf.at[pl.ds(slot_base + t, 1)],
                sem.at[slot_base + t],
            ).start()
            return carry

        jax.lax.fori_loop(0, T, body, 0)

    # Prime the pipeline on the very first step.
    @pl.when(i == 0)
    def _():
        start_fetch(0, 0)

    # Prefetch the next tile's word rows into the other slot while we compute this one.
    @pl.when(i + 1 < nsteps)
    def _():
        start_fetch(i + 1, (1 - slot) * T)

    # Wait for this tile's word rows.
    def wait_body(t, carry):
        pltpu.make_async_copy(
            word_hbm.at[pl.ds(0, 1)],
            wbuf.at[pl.ds(slot * T + t, 1)],
            sem.at[slot * T + t],
        ).wait()
        return carry

    jax.lax.fori_loop(0, T, wait_body, 0)

    start = pl.multiple_of(slot * T, T)
    w = wbuf[pl.ds(start, T), :].astype(jnp.float32)
    y = w + extra_ref[...].astype(jnp.float32)
    o_ref[...] = _layer_norm_rows(y, gamma_ref[...], beta_ref[...]).astype(o_ref.dtype)


def pallas_token_embed_ln(input_ids, extra, word_table, gamma, beta, *, tokens_per_tile=32):
    """Fused word-row DMA gather + (tt+pos) add + LayerNorm for the text tokens."""
    B, S = input_ids.shape
    H = word_table.shape[1]
    n = B * S
    T = min(tokens_per_tile, _round_up(n, 8))
    n_pad = _round_up(n, T)

    ids = input_ids.reshape(n).astype(jnp.int32)
    extra_flat = extra.reshape(n, H).astype(word_table.dtype)
    if n_pad != n:
        ids = jnp.pad(ids, (0, n_pad - n))                      # pad ids -> row 0 (valid)
        extra_flat = jnp.pad(extra_flat, ((0, n_pad - n), (0, 0)))
    n_tiles = n_pad // T

    grid_spec = pltpu.PrefetchScalarGridSpec(
        num_scalar_prefetch=1,
        grid=(n_tiles,),
        in_specs=[
            pl.BlockSpec(memory_space=pl.ANY),                  # word table stays in HBM
            pl.BlockSpec((T, H), lambda i, ids: (i, 0)),        # extra slab tile
            pl.BlockSpec((1, H), lambda i, ids: (0, 0)),        # gamma
            pl.BlockSpec((1, H), lambda i, ids: (0, 0)),        # beta
        ],
        out_specs=pl.BlockSpec((T, H), lambda i, ids: (i, 0)),
        scratch_shapes=[
            pltpu.VMEM((2 * T, H), word_table.dtype),           # double-buffered word rows
            pltpu.SemaphoreType.DMA((2 * T,)),
        ],
    )
    out = pl.pallas_call(
        _text_embed_ln_kernel,
        out_shape=jax.ShapeDtypeStruct((n_pad, H), word_table.dtype),
        grid_spec=grid_spec,
        # manual double-buffer carries state across steps -> must stay sequential
        compiler_params=pltpu.CompilerParams(dimension_semantics=("arbitrary",)),
    )(ids, word_table, extra_flat, gamma.reshape(1, H), beta.reshape(1, H))
    return out[:n].reshape(B, S, H)


# ----------------------------- graph kernel (flattened rows, resident Wg) -----------------------------

def _graph_embed_ln_kernel(g_ref, w_ref, b_ref, extra_ref, gamma_ref, beta_ref, o_ref):
    y = jnp.dot(g_ref[...], w_ref[...], preferred_element_type=jnp.float32)
    y = y + b_ref[...].astype(jnp.float32) + extra_ref[...].astype(jnp.float32)
    o_ref[...] = _layer_norm_rows(y, gamma_ref[...], beta_ref[...]).astype(o_ref.dtype)


def pallas_graph_embed_ln(g, wg, bg, extra, gamma, beta, *, tm_cap=256):
    """Fused Linear (g @ Wg + bg) + (token_type[1] + position) + LayerNorm over flattened rows."""
    B, G, K = g.shape
    H = wg.shape[1]
    M = B * G
    tm = min(tm_cap, _round_up(M, 8))
    M_pad = _round_up(M, tm)

    g2 = g.reshape(M, K)
    extra2 = extra.reshape(M, H).astype(g.dtype)
    if M_pad != M:
        g2 = jnp.pad(g2, ((0, M_pad - M), (0, 0)))
        extra2 = jnp.pad(extra2, ((0, M_pad - M), (0, 0)))

    grid = (M_pad // tm,)
    grid_spec = pltpu.PrefetchScalarGridSpec(
        num_scalar_prefetch=0,
        grid=grid,
        in_specs=[
            pl.BlockSpec((tm, K), lambda m: (m, 0)),     # g row tile
            pl.BlockSpec((K, H), lambda m: (0, 0)),      # full Wg, resident (constant index)
            pl.BlockSpec((1, H), lambda m: (0, 0)),      # bias
            pl.BlockSpec((tm, H), lambda m: (m, 0)),     # tt[1] + pos rows
            pl.BlockSpec((1, H), lambda m: (0, 0)),      # gamma
            pl.BlockSpec((1, H), lambda m: (0, 0)),      # beta
        ],
        out_specs=pl.BlockSpec((tm, H), lambda m: (m, 0)),
    )
    out = pl.pallas_call(
        _graph_embed_ln_kernel,
        out_shape=jax.ShapeDtypeStruct((M_pad, H), g.dtype),
        grid_spec=grid_spec,
        compiler_params=pltpu.CompilerParams(dimension_semantics=("parallel",)),
    )(g2, wg, bg.reshape(1, H), extra2, gamma.reshape(1, H), beta.reshape(1, H))
    return out[:M].reshape(B, G, H)


# ----------------------------- module forward (glue) -----------------------------

def pair_bert_embeddings_forward(params, input_ids, token_type_ids=None,
                                 position_ids=None, graph_embedding=None,
                                 past_key_values_length=0):
    word_table = params['word_emb']   # (vocab, H)
    pos_table = params['pos_emb']     # (max_pos, H)
    tt_table = params['tt_emb']       # (type_vocab, H)
    gamma, beta = params['ln_g'], params['ln_b']
    B, S = input_ids.shape

    G = 0 if graph_embedding is None else graph_embedding[0].shape[1]
    total = S + G

    if token_type_ids is None:
        # module has no registered token_type_ids buffer -> zeros
        token_type_ids = jnp.zeros((B, S), jnp.int32)
    token_type_ids = jnp.broadcast_to(token_type_ids.astype(jnp.int32), (B, S))

    if position_ids is None:
        pos_row = past_key_values_length + jnp.arange(total, dtype=jnp.int32)
        pos_ids = jnp.broadcast_to(pos_row[None, :], (B, total))
    else:
        # handles (total,), (1, total) and per-example (B, total)
        pos_ids = jnp.broadcast_to(position_ids.astype(jnp.int32).reshape(-1, position_ids.shape[-1]),
                                   (B, total))

    # ---- text tokens ----
    pos_ids_text = pos_ids[:, :S]
    extra_text = (jnp.take(tt_table, token_type_ids, axis=0)
                  + jnp.take(pos_table, pos_ids_text, axis=0))          # (B, S, H)
    text_out = pallas_token_embed_ln(input_ids, extra_text, word_table, gamma, beta)

    if graph_embedding is None:
        return text_out

    # ---- graph tokens ----
    g = graph_embedding[0]
    for extra_g in graph_embedding[1:]:
        g = g + extra_g

    pos_ids_graph = pos_ids[:, S:S + G]
    extra_graph = tt_table[1][None, None, :] + jnp.take(pos_table, pos_ids_graph, axis=0)  # (B, G, H)
    graph_out = pallas_graph_embed_ln(g, params['graph_w'], params['graph_b'],
                                      extra_graph, gamma, beta)
    return jnp.concatenate([text_out, graph_out], axis=1)


# ----------------------------- reference + init -----------------------------

def _ln_ref(x, g, b):
    mean = x.mean(-1, keepdims=True)
    var = ((x - mean) ** 2).mean(-1, keepdims=True)
    return (x - mean) * jax.lax.rsqrt(var + LN_EPS) * g + b


def reference_forward(params, input_ids, graph_embedding):
    B, S = input_ids.shape
    we = params['word_emb'][input_ids]
    g = graph_embedding[0]
    for extra_g in graph_embedding[1:]:
        g = g + extra_g
    ge = jnp.einsum('bgk,kh->bgh', g, params['graph_w']) + params['graph_b']
    emb = jnp.concatenate([we, ge], axis=1)
    G = g.shape[1]
    tt_ids = jnp.concatenate([jnp.zeros((B, S), jnp.int32),
                              jnp.ones((B, G), jnp.int32)], axis=1)
    emb = emb + params['tt_emb'][tt_ids]
    emb = emb + params['pos_emb'][jnp.arange(S + G)][None]
    return _ln_ref(emb, params['ln_g'], params['ln_b'])


def reference_text_only(params, input_ids):
    B, S = input_ids.shape
    emb = (params['word_emb'][input_ids]
           + params['tt_emb'][jnp.zeros((B, S), jnp.int32)]
           + params['pos_emb'][jnp.arange(S)][None])
    return _ln_ref(emb, params['ln_g'], params['ln_b'])


def init_params(key, vocab, hidden, max_pos, type_vocab, graph_dim, pad_token_id=0):
    ks = jax.random.split(key, 4)
    f32 = jnp.float32
    s = 0.02
    word = s * jax.random.normal(ks[0], (vocab, hidden), f32)
    word = word.at[pad_token_id].set(0.0)   # nn.Embedding padding_idx init
    return {
        'word_emb': word,
        'pos_emb': s * jax.random.normal(ks[1], (max_pos, hidden), f32),
        'tt_emb': s * jax.random.normal(ks[2], (type_vocab, hidden), f32),
        'graph_w': s * jax.random.normal(ks[3], (graph_dim, hidden), f32),
        'graph_b': jnp.zeros((hidden,), f32),
        'ln_g': jnp.ones((hidden,), f32),
        'ln_b': jnp.zeros((hidden,), f32),
    }


if __name__ == "__main__":
    # small config consistent with PairBertEmbeddings(config)
    B, S, H = 2, 8, 32            # batch, seq_len, hidden_size
    VOCAB, MAX_POS, TYPE_VOCAB = 64, 32, 2
    GRAPH_DIM, G = 16, 4          # graph_embedding_dim, graph_length
    PAD_ID = 0

    root = jax.random.PRNGKey(0)
    k_ids, k_g0, k_g1, k_params = jax.random.split(root, 4)
    input_ids = jax.random.randint(k_ids, (B, S), 0, VOCAB, dtype=jnp.int32)
    g0 = jax.random.normal(k_g0, (B, G, GRAPH_DIM), jnp.float32)
    g1 = jax.random.normal(k_g1, (B, G, GRAPH_DIM), jnp.float32)
    params = init_params(k_params, VOCAB, H, MAX_POS, TYPE_VOCAB, GRAPH_DIM, PAD_ID)

    fwd = jax.jit(functools.partial(pair_bert_embeddings_forward, params))

    # full path: graph_embedding is a pair -> summed, projected, concatenated
    out = jax.block_until_ready(fwd(input_ids, graph_embedding=(g0, g1)))
    assert out.shape == (B, S + G, H)
    assert bool(jnp.all(jnp.isfinite(out)))
    ref = reference_forward(params, input_ids, (g0, g1))
    assert jnp.allclose(out, ref, atol=2e-3, rtol=2e-3), float(jnp.max(jnp.abs(out - ref)))

    # text-only path (graph_embedding=None)
    out_text = jax.block_until_ready(fwd(input_ids))
    assert out_text.shape == (B, S, H)
    ref_text = reference_text_only(params, input_ids)
    assert jnp.allclose(out_text, ref_text, atol=2e-3, rtol=2e-3), \
        float(jnp.max(jnp.abs(out_text - ref_text)))

    print("KERNEL_OK")
</pallas_src>

<mosaic_0001>
module attributes {stable_mosaic.version = 11 : i64} {
  func.func @_text_embed_ln_kernel(%arg0: i32, %arg1: memref<16xi32, #tpu.memory_space<smem>>, %arg2: memref<64x32xf32, #tpu.memory_space<any>>, %arg3: memref<16x32xf32, #tpu.memory_space<vmem>>, %arg4: memref<1x32xf32, #tpu.memory_space<vmem>>, %arg5: memref<1x32xf32, #tpu.memory_space<vmem>>, %arg6: memref<16x32xf32, #tpu.memory_space<vmem>>, %arg7: memref<32x32xf32, #tpu.memory_space<vmem>>, %arg8: memref<32x!tpu.dma_semaphore, #tpu.memory_space<semaphore_mem>>) attributes {dimension_semantics = [#tpu.dimension_semantics<arbitrary>], iteration_bounds = array<i64: 1>, scalar_prefetch = 1 : i64, scratch_operands = 2 : i64, tpu.core_type = #tpu.core_type<tc>, window_params = [{}, {transform_indices = @transform_1, window_bounds = array<i64: 16, 32>}, {pipeline_mode = #tpu.pipeline_mode<synchronous>, transform_indices = @transform_2, window_bounds = array<i64: 1, 32>}, {pipeline_mode = #tpu.pipeline_mode<synchronous>, transform_indices = @transform_3, window_bounds = array<i64: 1, 32>}, {transform_indices = @transform_4, window_bounds = array<i64: 16, 32>}]} {
    %c2_i32 = arith.constant 2 : i32
    %c0_i32 = arith.constant 0 : i32
    %0 = arith.cmpi eq, %c2_i32, %c0_i32 : i32
    %c1_i32 = arith.constant 1 : i32
    %1 = arith.select %0, %c1_i32, %c2_i32 : i32
    %2 = arith.remsi %arg0, %1 : i32
    %c0_i32_0 = arith.constant 0 : i32
    %3 = arith.cmpi ne, %2, %c0_i32_0 : i32
    %c0_i32_1 = arith.constant 0 : i32
    %4 = arith.cmpi slt, %2, %c0_i32_1 : i32
    %c0_i32_2 = arith.constant 0 : i32
    %5 = arith.cmpi slt, %1, %c0_i32_2 : i32
    %6 = arith.xori %4, %5 : i1
    %7 = arith.andi %6, %3 : i1
    %8 = arith.addi %2, %1 : i32
    %9 = arith.select %7, %8, %2 : i32
    %c0_i32_3 = arith.constant 0 : i32
    %10 = arith.cmpi eq, %arg0, %c0_i32_3 : i32
    %11 = arith.extui %10 : i1 to i32
    %c0_i32_4 = arith.constant 0 : i32
    %12 = arith.cmpi ne, %11, %c0_i32_4 : i32
    scf.if %12 {
      %c0_i32_25 = arith.constant 0 : i32
      %c16_i32_26 = arith.constant 16 : i32
      %51 = arith.addi %c0_i32_25, %c16_i32_26 : i32
      %c1_i32_27 = arith.constant 1 : i32
      scf.for %arg9 = %c0_i32_25 to %51 step %c1_i32_27  : i32 {
        %c0_i32_29 = arith.constant 0 : i32
        %52 = arith.addi %c0_i32_29, %arg9 : i32
        %53 = arith.index_cast %52 : i32 to index
        %54 = memref.load %arg1[%53] : memref<16xi32, #tpu.memory_space<smem>>
        %c0_i32_30 = arith.constant 0 : i32
        %55 = arith.addi %c0_i32_30, %arg9 : i32
        %c0_i32_31 = arith.constant 0 : i32
        %56 = arith.addi %c0_i32_31, %arg9 : i32
        %c0_i32_32 = arith.constant 0 : i32
        %57 = tpu.memref_slice %arg2[%54, %c0_i32_32] : memref<64x32xf32, #tpu.memory_space<any>> -> memref<1x32xf32, #tpu.memory_space<any>>
        %c0_i32_33 = arith.constant 0 : i32
        %58 = tpu.memref_slice %arg7[%55, %c0_i32_33] : memref<32x32xf32, #tpu.memory_space<vmem>> -> memref<1x32xf32, #tpu.memory_space<vmem>>
        %59 = tpu.memref_slice %arg8[%56] : memref<32x!tpu.dma_semaphore, #tpu.memory_space<semaphore_mem>> -> memref<1x!tpu.dma_semaphore, #tpu.memory_space<semaphore_mem>>
        %60 = tpu.memref_squeeze %59 : memref<1x!tpu.dma_semaphore, #tpu.memory_space<semaphore_mem>> -> memref<!tpu.dma_semaphore, #tpu.memory_space<semaphore_mem>>
        tpu.enqueue_dma source(%57 : memref<1x32xf32, #tpu.memory_space<any>>) target(%58 : memref<1x32xf32, #tpu.memory_space<vmem>>) target_semaphore(%60 : memref<!tpu.dma_semaphore, #tpu.memory_space<semaphore_mem>>)
      }
      %c16_i32_28 = arith.constant 16 : i32
    } else {
    }
    %c1_i32_5 = arith.constant 1 : i32
    %13 = arith.addi %arg0, %c1_i32_5 : i32
    %c1_i32_6 = arith.constant 1 : i32
    %14 = arith.cmpi slt, %13, %c1_i32_6 : i32
    %15 = arith.extui %14 : i1 to i32
    %c0_i32_7 = arith.constant 0 : i32
    %16 = arith.cmpi ne, %15, %c0_i32_7 : i32
    scf.if %16 {
      %c1_i32_25 = arith.constant 1 : i32
      %51 = arith.addi %arg0, %c1_i32_25 : i32
      %c1_i32_26 = arith.constant 1 : i32
      %52 = arith.subi %c1_i32_26, %9 : i32
      %c16_i32_27 = arith.constant 16 : i32
      %53 = arith.muli %52, %c16_i32_27 : i32
      %c16_i32_28 = arith.constant 16 : i32
      %54 = arith.muli %51, %c16_i32_28 : i32
      %c0_i32_29 = arith.constant 0 : i32
      %c16_i32_30 = arith.constant 16 : i32
      %55 = arith.addi %c0_i32_29, %c16_i32_30 : i32
      %c1_i32_31 = arith.constant 1 : i32
      scf.for %arg9 = %c0_i32_29 to %55 step %c1_i32_31  : i32 {
        %56 = arith.addi %54, %arg9 : i32
        %57 = arith.index_cast %56 : i32 to index
        %58 = memref.load %arg1[%57] : memref<16xi32, #tpu.memory_space<smem>>
        %59 = arith.addi %53, %arg9 : i32
        %60 = arith.addi %53, %arg9 : i32
        %c0_i32_33 = arith.constant 0 : i32
        %61 = tpu.memref_slice %arg2[%58, %c0_i32_33] : memref<64x32xf32, #tpu.memory_space<any>> -> memref<1x32xf32, #tpu.memory_space<any>>
        %c0_i32_34 = arith.constant 0 : i32
        %62 = tpu.memref_slice %arg7[%59, %c0_i32_34] : memref<32x32xf32, #tpu.memory_space<vmem>> -> memref<1x32xf32, #tpu.memory_space<vmem>>
        %63 = tpu.memref_slice %arg8[%60] : memref<32x!tpu.dma_semaphore, #tpu.memory_space<semaphore_mem>> -> memref<1x!tpu.dma_semaphore, #tpu.memory_space<semaphore_mem>>
        %64 = tpu.memref_squeeze %63 : memref<1x!tpu.dma_semaphore, #tpu.memory_space<semaphore_mem>> -> memref<!tpu.dma_semaphore, #tpu.memory_space<semaphore_mem>>
        tpu.enqueue_dma source(%61 : memref<1x32xf32, #tpu.memory_space<any>>) target(%62 : memref<1x32xf32, #tpu.memory_space<vmem>>) target_semaphore(%64 : memref<!tpu.dma_semaphore, #tpu.memory_space<semaphore_mem>>)
      }
      %c16_i32_32 = arith.constant 16 : i32
    } else {
    }
    %c0_i32_8 = arith.constant 0 : i32
    %c16_i32 = arith.constant 16 : i32
    %17 = arith.addi %c0_i32_8, %c16_i32 : i32
    %c1_i32_9 = arith.constant 1 : i32
    scf.for %arg9 = %c0_i32_8 to %17 step %c1_i32_9  : i32 {
      %c16_i32_25 = arith.constant 16 : i32
      %51 = arith.muli %9, %c16_i32_25 : i32
      %52 = arith.addi %51, %arg9 : i32
      %c16_i32_26 = arith.constant 16 : i32
      %53 = arith.muli %9, %c16_i32_26 : i32
      %54 = arith.addi %53, %arg9 : i32
      %c0_i32_27 = arith.constant 0 : i32
      %c0_i32_28 = arith.constant 0 : i32
      %55 = tpu.memref_slice %arg2[%c0_i32_27, %c0_i32_28] : memref<64x32xf32, #tpu.memory_space<any>> -> memref<1x32xf32, #tpu.memory_space<any>>
      %c0_i32_29 = arith.constant 0 : i32
      %56 = tpu.memref_slice %arg7[%52, %c0_i32_29] : memref<32x32xf32, #tpu.memory_space<vmem>> -> memref<1x32xf32, #tpu.memory_space<vmem>>
      %57 = tpu.memref_slice %arg8[%54] : memref<32x!tpu.dma_semaphore, #tpu.memory_space<semaphore_mem>> -> memref<1x!tpu.dma_semaphore, #tpu.memory_space<semaphore_mem>>
      %58 = tpu.memref_squeeze %57 : memref<1x!tpu.dma_semaphore, #tpu.memory_space<semaphore_mem>> -> memref<!tpu.dma_semaphore, #tpu.memory_space<semaphore_mem>>
      tpu.wait_dma2 semaphore(%58 : memref<!tpu.dma_semaphore, #tpu.memory_space<semaphore_mem>>) src(%55 : memref<1x32xf32, #tpu.memory_space<any>>) dst(%56 : memref<1x32xf32, #tpu.memory_space<vmem>>)
    }
    %c16_i32_10 = arith.constant 16 : i32
    %c16_i32_11 = arith.constant 16 : i32
    %18 = arith.muli %9, %c16_i32_11 : i32
    %19 = tpu.assume_multiple %18, 16 : i32
    %20 = arith.index_cast %19 : i32 to index
    %c0 = arith.constant 0 : index
    %21 = vector.load %arg7[%20, %c0] : memref<32x32xf32, #tpu.memory_space<vmem>>, vector<16x32xf32>
    %c0_12 = arith.constant 0 : index
    %c0_13 = arith.constant 0 : index
    %22 = vector.load %arg3[%c0_12, %c0_13] : memref<16x32xf32, #tpu.memory_space<vmem>>, vector<16x32xf32>
    %23 = arith.addf %21, %22 : vector<16x32xf32>
    %c0_14 = arith.constant 0 : index
    %c0_15 = arith.constant 0 : index
    %24 = vector.load %arg4[%c0_14, %c0_15] : memref<1x32xf32, #tpu.memory_space<vmem>>, vector<1x32xf32>
    %c0_16 = arith.constant 0 : index
    %c0_17 = arith.constant 0 : index
    %25 = vector.load %arg5[%c0_16, %c0_17] : memref<1x32xf32, #tpu.memory_space<vmem>>, vector<1x32xf32>
    %cst = arith.constant dense<0.000000e+00> : vector<16xf32>
    %26 = vector.multi_reduction <add>, %23, %cst [1] : vector<16x32xf32> to vector<16xf32>
    %27 = vector.shape_cast %26 : vector<16xf32> to vector<16x1xf32>
    %28 = arith.mulf %23, %23 : vector<16x32xf32>
    %cst_18 = arith.constant dense<0.000000e+00> : vector<16xf32>
    %29 = vector.multi_reduction <add>, %28, %cst_18 [1] : vector<16x32xf32> to vector<16xf32>
    %30 = vector.shape_cast %29 : vector<16xf32> to vector<16x1xf32>
    %cst_19 = arith.constant 3.125000e-02 : f32
    %31 = vector.broadcast %cst_19 : f32 to vector<16x1xf32>
    %32 = arith.mulf %27, %31 : vector<16x1xf32>
    %cst_20 = arith.constant 3.125000e-02 : f32
    %33 = vector.broadcast %cst_20 : f32 to vector<16x1xf32>
    %34 = arith.mulf %30, %33 : vector<16x1xf32>
    %35 = arith.mulf %32, %32 : vector<16x1xf32>
    %36 = arith.subf %34, %35 : vector<16x1xf32>
    %cst_21 = arith.constant 0.000000e+00 : f32
    %37 = vector.broadcast %cst_21 : f32 to vector<16x1xf32>
    %38 = arith.maximumf %36, %37 : vector<16x1xf32>
    %39 = vector.broadcast %32 : vector<16x1xf32> to vector<16x32xf32>
    %40 = arith.subf %23, %39 : vector<16x32xf32>
    %cst_22 = arith.constant 9.99999996E-13 : f32
    %41 = vector.broadcast %cst_22 : f32 to vector<16x1xf32>
    %42 = arith.addf %38, %41 : vector<16x1xf32>
    %43 = math.rsqrt %42 : vector<16x1xf32>
    %44 = vector.broadcast %43 : vector<16x1xf32> to vector<16x32xf32>
    %45 = arith.mulf %40, %44 : vector<16x32xf32>
    %46 = vector.broadcast %24 : vector<1x32xf32> to vector<16x32xf32>
    %47 = arith.mulf %45, %46 : vector<16x32xf32>
    %48 = vector.broadcast %25 : vector<1x32xf32> to vector<16x32xf32>
    %49 = arith.addf %47, %48 : vector<16x32xf32>
    %c0_23 = arith.constant 0 : index
    %c0_24 = arith.constant 0 : index
    %50 = vector.load %arg6[%c0_23, %c0_24] : memref<16x32xf32, #tpu.memory_space<vmem>>, vector<16x32xf32>
    tpu.vector_store %arg6[%c0_23, %c0_24], %49 {strides = array<i32>} : memref<16x32xf32, #tpu.memory_space<vmem>>, vector<16x32xf32>,
    return
  }
  func.func @transform_1(%arg0: i32, %arg1: memref<16xi32, #tpu.memory_space<smem>>) -> (i32, i32) {
    %c0_i32 = arith.constant 0 : i32
    %c0_i32_0 = arith.constant 0 : i32
    return %arg0, %c0_i32 : i32, i32
  }
  func.func @transform_2(%arg0: i32, %arg1: memref<16xi32, #tpu.memory_space<smem>>) -> (i32, i32) {
    %c0_i32 = arith.constant 0 : i32
    %c0_i32_0 = arith.constant 0 : i32
    %c0_i32_1 = arith.constant 0 : i32
    return %c0_i32, %c0_i32_0 : i32, i32
  }
  func.func @transform_3(%arg0: i32, %arg1: memref<16xi32, #tpu.memory_space<smem>>) -> (i32, i32) {
    %c0_i32 = arith.constant 0 : i32
    %c0_i32_0 = arith.constant 0 : i32
    %c0_i32_1 = arith.constant 0 : i32
    return %c0_i32, %c0_i32_0 : i32, i32
  }
  func.func @transform_4(%arg0: i32, %arg1: memref<16xi32, #tpu.memory_space<smem>>) -> (i32, i32) {
    %c0_i32 = arith.constant 0 : i32
    %c0_i32_0 = arith.constant 0 : i32
    return %arg0, %c0_i32 : i32, i32
  }
}

module attributes {stable_mosaic.version = 11 : i64} {
  func.func @_graph_embed_ln_kernel(%arg0: i32, %arg1: memref<8x16xf32, #tpu.memory_space<vmem>>, %arg2: memref<16x32xf32, #tpu.memory_space<vmem>>, %arg3: memref<1x32xf32, #tpu.memory_space<vmem>>, %arg4: memref<8x32xf32, #tpu.memory_space<vmem>>, %arg5: memref<1x32xf32, #tpu.memory_space<vmem>>, %arg6: memref<1x32xf32, #tpu.memory_space<vmem>>, %arg7: memref<8x32xf32, #tpu.memory_space<vmem>>) attributes {dimension_semantics = [#tpu.dimension_semantics<parallel>], iteration_bounds = array<i64: 1>, scalar_prefetch = 0 : i64, scratch_operands = 0 : i64, tpu.core_type = #tpu.core_type<tc>, window_params = [{transform_indices = @transform_0, window_bounds = array<i64: 8, 16>}, {pipeline_mode = #tpu.pipeline_mode<synchronous>, transform_indices = @transform_1, window_bounds = array<i64: 16, 32>}, {pipeline_mode = #tpu.pipeline_mode<synchronous>, transform_indices = @transform_2, window_bounds = array<i64: 1, 32>}, {transform_indices = @transform_3, window_bounds = array<i64: 8, 32>}, {pipeline_mode = #tpu.pipeline_mode<synchronous>, transform_indices = @transform_4, window_bounds = array<i64: 1, 32>}, {pipeline_mode = #tpu.pipeline_mode<synchronous>, transform_indices = @transform_5, window_bounds = array<i64: 1, 32>}, {transform_indices = @transform_6, window_bounds = array<i64: 8, 32>}]} {
    %c0 = arith.constant 0 : index
    %c0_0 = arith.constant 0 : index
    %0 = vector.load %arg1[%c0, %c0_0] : memref<8x16xf32, #tpu.memory_space<vmem>>, vector<8x16xf32>
    %c0_1 = arith.constant 0 : index
    %c0_2 = arith.constant 0 : index
    %1 = vector.load %arg2[%c0_1, %c0_2] : memref<16x32xf32, #tpu.memory_space<vmem>>, vector<16x32xf32>
    %cst = arith.constant dense<0.000000e+00> : vector<8x32xf32>
    %2 = tpu.matmul %0, %1, %cst {dimension_numbers = #tpu.dot_dimension_numbers<[1], [0], [0], [1], [0, 0, 1, 1], [], []>} : vector<8x16xf32>, vector<16x32xf32>, vector<8x32xf32> -> vector<8x32xf32>
    %c0_3 = arith.constant 0 : index
    %c0_4 = arith.constant 0 : index
    %3 = vector.load %arg3[%c0_3, %c0_4] : memref<1x32xf32, #tpu.memory_space<vmem>>, vector<1x32xf32>
    %4 = vector.broadcast %3 : vector<1x32xf32> to vector<8x32xf32>
    %5 = arith.addf %2, %4 : vector<8x32xf32>
    %c0_5 = arith.constant 0 : index
    %c0_6 = arith.constant 0 : index
    %6 = vector.load %arg4[%c0_5, %c0_6] : memref<8x32xf32, #tpu.memory_space<vmem>>, vector<8x32xf32>
    %7 = arith.addf %5, %6 : vector<8x32xf32>
    %c0_7 = arith.constant 0 : index
    %c0_8 = arith.constant 0 : index
    %8 = vector.load %arg5[%c0_7, %c0_8] : memref<1x32xf32, #tpu.memory_space<vmem>>, vector<1x32xf32>
    %c0_9 = arith.constant 0 : index
    %c0_10 = arith.constant 0 : index
    %9 = vector.load %arg6[%c0_9, %c0_10] : memref<1x32xf32, #tpu.memory_space<vmem>>, vector<1x32xf32>
    %cst_11 = arith.constant dense<0.000000e+00> : vector<8xf32>
    %10 = vector.multi_reduction <add>, %7, %cst_11 [1] : vector<8x32xf32> to vector<8xf32>
    %11 = vector.shape_cast %10 : vector<8xf32> to vector<8x1xf32>
    %12 = arith.mulf %7, %7 : vector<8x32xf32>
    %cst_12 = arith.constant dense<0.000000e+00> : vector<8xf32>
    %13 = vector.multi_reduction <add>, %12, %cst_12 [1] : vector<8x32xf32> to vector<8xf32>
    %14 = vector.shape_cast %13 : vector<8xf32> to vector<8x1xf32>
    %cst_13 = arith.constant 3.125000e-02 : f32
    %15 = vector.broadcast %cst_13 : f32 to vector<8x1xf32>
    %16 = arith.mulf %11, %15 : vector<8x1xf32>
    %cst_14 = arith.constant 3.125000e-02 : f32
    %17 = vector.broadcast %cst_14 : f32 to vector<8x1xf32>
    %18 = arith.mulf %14, %17 : vector<8x1xf32>
    %19 = arith.mulf %16, %16 : vector<8x1xf32>
    %20 = arith.subf %18, %19 : vector<8x1xf32>
    %cst_15 = arith.constant 0.000000e+00 : f32
    %21 = vector.broadcast %cst_15 : f32 to vector<8x1xf32>
    %22 = arith.maximumf %20, %21 : vector<8x1xf32>
    %23 = vector.broadcast %16 : vector<8x1xf32> to vector<8x32xf32>
    %24 = arith.subf %7, %23 : vector<8x32xf32>
    %cst_16 = arith.constant 9.99999996E-13 : f32
    %25 = vector.broadcast %cst_16 : f32 to vector<8x1xf32>
    %26 = arith.addf %22, %25 : vector<8x1xf32>
    %27 = math.rsqrt %26 : vector<8x1xf32>
    %28 = vector.broadcast %27 : vector<8x1xf32> to vector<8x32xf32>
    %29 = arith.mulf %24, %28 : vector<8x32xf32>
    %30 = vector.broadcast %8 : vector<1x32xf32> to vector<8x32xf32>
    %31 = arith.mulf %29, %30 : vector<8x32xf32>
    %32 = vector.broadcast %9 : vector<1x32xf32> to vector<8x32xf32>
    %33 = arith.addf %31, %32 : vector<8x32xf32>
    %c0_17 = arith.constant 0 : index
    %c0_18 = arith.constant 0 : index
    %34 = vector.load %arg7[%c0_17, %c0_18] : memref<8x32xf32, #tpu.memory_space<vmem>>, vector<8x32xf32>
    tpu.vector_store %arg7[%c0_17, %c0_18], %33 {strides = array<i32>} : memref<8x32xf32, #tpu.memory_space<vmem>>, vector<8x32xf32>,
    return
  }
  func.func @transform_0(%arg0: i32) -> (i32, i32) {
    %c0_i32 = arith.constant 0 : i32
    %c0_i32_0 = arith.constant 0 : i32
    return %arg0, %c0_i32 : i32, i32
  }
  func.func @transform_1(%arg0: i32) -> (i32, i32) {
    %c0_i32 = arith.constant 0 : i32
    %c0_i32_0 = arith.constant 0 : i32
    %c0_i32_1 = arith.constant 0 : i32
    return %c0_i32, %c0_i32_0 : i32, i32
  }
  func.func @transform_2(%arg0: i32) -> (i32, i32) {
    %c0_i32 = arith.constant 0 : i32
    %c0_i32_0 = arith.constant 0 : i32
    %c0_i32_1 = arith.constant 0 : i32
    return %c0_i32, %c0_i32_0 : i32, i32
  }
  func.func @transform_3(%arg0: i32) -> (i32, i32) {
    %c0_i32 = arith.constant 0 : i32
    %c0_i32_0 = arith.constant 0 : i32
    return %arg0, %c0_i32 : i32, i32
  }
  func.func @transform_4(%arg0: i32) -> (i32, i32) {
    %c0_i32 = arith.constant 0 : i32
    %c0_i32_0 = arith.constant 0 : i32
    %c0_i32_1 = arith.constant 0 : i32
    return %c0_i32, %c0_i32_0 : i32, i32
  }
  func.func @transform_5(%arg0: i32) -> (i32, i32) {
    %c0_i32 = arith.constant 0 : i32
    %c0_i32_0 = arith.constant 0 : i32
    %c0_i32_1 = arith.constant 0 : i32
    return %c0_i32, %c0_i32_0 : i32, i32
  }
  func.func @transform_6(%arg0: i32) -> (i32, i32) {
    %c0_i32 = arith.constant 0 : i32
    %c0_i32_0 = arith.constant 0 : i32
    return %arg0, %c0_i32 : i32, i32
  }
}

</mosaic_0001>

<llo_original>
// kernel: pair_bert_embeddings_forward.2
$region0: #{pair_bert_embeddings_forward.2}
  #allocation0 [shape = 'u32[]', space=smem, size = 0x4, offset = 0x4, fixed_abs, tag = 'smem constant byte address 0x4 - core index']
  #allocation1 [shape = 'u32[72,128]{1,0:T(1,128)}', space=vmem, size = 0x9000, scoped, tag = 'internal scratch']
  #allocation2 [shape = 'f32[32,32]{1,0:T(8,128)}', space=vmem, size = 0x4000, scoped, tag = 'scratch operand']
  #allocation3 [shape = 's32[32]{0}', space=sflag, size = 0x80, scoped, tag = 'scratch operand']
  #allocation4 [shape = 's32[1]{0}', space=sflag, size = 0x4, scoped, tag = 'scoped memory for pair_bert_embeddings_forward.2']
  #allocation5 [shape = 'u8[512]{0}', space=smem, size = 0x200, scoped, tag = 'prefetched SMEM operand 0']
  #allocation6 [shape = 's32[]', space=sflag, size = 0x4, offset = 0, fixed_abs, tag = 'sflag constant byte address 0x0 - dummy sync flag']
  #allocation7 [shape = 's32[]', space=sflag, size = 0x4, offset = 0, fixed_abs, tag = 'sflag constant byte address 0x0 - dummy sync flag']
  %s0 = inlined_call_operand.vmem [shape: s32[16], index: 0, kind: input, shape index: {}]
  %s1 = inlined_call_operand.vmem [shape: f32[64,32], index: 1, kind: input, shape index: {}]
  %s2 = inlined_call_operand.vmem [shape: f32[16,32], index: 2, kind: input, shape index: {}]
  %s3 = inlined_call_operand.vmem [shape: f32[1,32], index: 3, kind: input, shape index: {}]
  %s4 = inlined_call_operand.vmem [shape: f32[1,32], index: 4, kind: input, shape index: {}]
  %s5 = inlined_call_operand.vmem [shape: f32[16,32], index: 5, kind: output, shape index: {}]
  %s6 = sld [smem:[#allocation0]]
  $region111: #{pair_bert_embeddings_forward.2} parent=0
    _
  %s8 = ssub.s32 1, %s6
  %s9 = scalar_select 0, %s8, %s6
  %s11 = sshll.u32 %s0, 4
  %s12 = int_to_ptr.vmem [resolvable:$true] %s11
  %14 = dma.vmem_to_smem %s12, 16, [#allocation5], [#allocation4]
  %16 = dma.done [#allocation4], 16
  %17 = sfence
  // Predicated region
  $region2: #{pair_bert_embeddings_forward.2} parent=0 // pred_check
    _
  $region3: #{pair_bert_embeddings_forward.2} parent=0 // pred_check_branch
    %19 = sbr.rel (0) target = $region5
  $region4: #{pair_bert_embeddings_forward.2} parent=0 // pred_region
    _
  $region5: #{pair_bert_embeddings_forward.2} parent=0 // pred_fallthru
    _
  // Predicated region
  $region6: #{pair_bert_embeddings_forward.2} parent=0 // pred_check
    _
  $region7: #{pair_bert_embeddings_forward.2} parent=0 // pred_check_branch
    %21 = sbr.rel (0) target = $region9
  $region8: #{pair_bert_embeddings_forward.2} parent=0 // pred_region
    _
  $region9: #{pair_bert_embeddings_forward.2} parent=0 // pred_fallthru
    _
  // Predicated region
  $region10: #{pair_bert_embeddings_forward.2} parent=0 // pred_check
    _
  $region11: #{pair_bert_embeddings_forward.2} parent=0 // pred_check_branch
    %23 = sbr.rel (0) target = $region13
  $region12: #{pair_bert_embeddings_forward.2} parent=0 // pred_region
    _
  $region13: #{pair_bert_embeddings_forward.2} parent=0 // pred_fallthru
    _
  %s24 = ssub.s32 0, 0
  %s25 = ssub.s32 0, 0
  %p26 = scmp.ne.s32.totalorder 0, 0
  %p27 = scmp.lt.s32.totalorder 0, 0
  %p28 = pnand %p27, %p26
  %p29 = pneg %p28
  %s30 = sadd.s32 0, 2
  %s31 = scalar_select %p29, %s30, 0
  %p32 = scmp.eq.s32.totalorder 0, 0
  // Predicated region
  $region14: #{pair_bert_embeddings_forward.2} parent=0 // pred_check
    %p33 = pneg %p32
  $region15: #{pair_bert_embeddings_forward.2} parent=0 // pred_check_branch
    %35 = sbr.rel (%p33) target = $region17
  $region16: #{pair_bert_embeddings_forward.2} parent=0 // pred_region
    loop: start=0, step=1, limit=16
    $region18: #{pair_bert_embeddings_forward.2} parent=16 // loop_pre_header
      _
    $region19: #{pair_bert_embeddings_forward.2} parent=16 // loop_header
      %s37 = sphi 0, %s41
      %p38 = scmp.ge.s32.totalorder %s37, 16
    $region20: #{pair_bert_embeddings_forward.2} parent=16 // loop_header_branch
      %40 = sbr.rel (%p38) target = $region24
    $region21: #{pair_bert_embeddings_forward.2} parent=16 // loop_body
      %s42 = sld [smem:[#allocation5 + %s37]]
      %s43 = scalar_lea.vmem %s1, %s42
      %s44 = scalar_lea.vmem [#allocation2], %s37
      %s45 = scalar_lea.sflag [#allocation3], %s37
      // Predicated region
      $region25: #{pair_bert_embeddings_forward.2} parent=21 // pred_check
        _
      $region26: #{pair_bert_embeddings_forward.2} parent=21 // pred_check_branch
        %47 = sbr.rel target = $region28
      $region27: #{pair_bert_embeddings_forward.2} parent=21 // pred_region
        // Predicated region
        $region40: #{pair_bert_embeddings_forward.2} parent=27 // pred_check
          _
        $region41: #{pair_bert_embeddings_forward.2} parent=27 // pred_check_branch
          %63 = sbr.rel (0) target = $region43
        $region42: #{pair_bert_embeddings_forward.2} parent=27 // pred_region
          %s65 = ssub.s32 2, 1
          loop: start=0, step=1, limit=1
          $region44: #{pair_bert_embeddings_forward.2} parent=42 // loop_pre_header
            _
          $region45: #{pair_bert_embeddings_forward.2} parent=42 // loop_header
            %s67 = sphi 0, %s71
            %p68 = scmp.ge.s32.totalorder %s67, 1
            %s72 = sphi %s43, %s43
            %s73 = sphi %s44, %s44
          $region46: #{pair_bert_embeddings_forward.2} parent=42 // loop_header_branch
            %70 = sbr.rel (%p68) target = $region50
          $region47: #{pair_bert_embeddings_forward.2} parent=42 // loop_body
            %v74 = vld [vmem:[%s72] sm:%s65]
            %75 = vst [vmem:[%s73] sm:%s65] %v74
          $region48: #{pair_bert_embeddings_forward.2} parent=42 // loop_footer
            %s71 = sadd.s32 1, %s67
          $region49: #{pair_bert_embeddings_forward.2} parent=42 // loop_footer_branch
            %66 = sbr.rel target = $region45
          $region50: #{pair_bert_embeddings_forward.2} parent=42 // loop_exit
            _
        $region43: #{pair_bert_embeddings_forward.2} parent=27 // pred_fallthru
          _
      $region28: #{pair_bert_embeddings_forward.2} parent=21 // pred_fallthru
        _
      // Predicated region
      $region29: #{pair_bert_embeddings_forward.2} parent=21 // pred_check
        _
      $region30: #{pair_bert_embeddings_forward.2} parent=21 // pred_check_branch
        %49 = sbr.rel (0) target = $region32
      $region31: #{pair_bert_embeddings_forward.2} parent=21 // pred_region
        %s51 = ssub.s32 2, 1
        loop: start=0, step=1, limit=1
        $region33: #{pair_bert_embeddings_forward.2} parent=31 // loop_pre_header
          _
        $region34: #{pair_bert_embeddings_forward.2} parent=31 // loop_header
          %s53 = sphi 0, %s57
          %p54 = scmp.ge.s32.totalorder %s53, 1
          %s58 = sphi %s43, %s43
          %s59 = sphi %s44, %s44
        $region35: #{pair_bert_embeddings_forward.2} parent=31 // loop_header_branch
          %56 = sbr.rel (%p54) target = $region39
        $region36: #{pair_bert_embeddings_forward.2} parent=31 // loop_body
          %v60 = vld [vmem:[%s58] sm:%s51]
          %61 = vst [vmem:[%s59] sm:%s51] %v60
        $region37: #{pair_bert_embeddings_forward.2} parent=31 // loop_footer
          %s57 = sadd.s32 1, %s53
        $region38: #{pair_bert_embeddings_forward.2} parent=31 // loop_footer_branch
          %52 = sbr.rel target = $region34
        $region39: #{pair_bert_embeddings_forward.2} parent=31 // loop_exit
          _
      $region32: #{pair_bert_embeddings_forward.2} parent=21 // pred_fallthru
        _
      // Predicated region
      $region51: #{pair_bert_embeddings_forward.2} parent=21 // pred_check
        _
      $region52: #{pair_bert_embeddings_forward.2} parent=21 // pred_check_branch
        %78 = sbr.rel (0) target = $region54
      $region53: #{pair_bert_embeddings_forward.2} parent=21 // pred_region
        %79 = vsyncadd %s45, 16
      $region54: #{pair_bert_embeddings_forward.2} parent=21 // pred_fallthru
        _
    $region22: #{pair_bert_embeddings_forward.2} parent=16 // loop_footer
      %s41 = sadd.s32 1, %s37
    $region23: #{pair_bert_embeddings_forward.2} parent=16 // loop_footer_branch
      %36 = sbr.rel target = $region19
    $region24: #{pair_bert_embeddings_forward.2} parent=16 // loop_exit
      _
  $region17: #{pair_bert_embeddings_forward.2} parent=0 // pred_fallthru
    _
  %s80 = sadd.s32 0, 1
  %p81 = scmp.lt.s32.totalorder %s80, 1
  // Predicated region
  $region55: #{pair_bert_embeddings_forward.2} parent=0 // pred_check
    %p82 = pneg %p81
  $region56: #{pair_bert_embeddings_forward.2} parent=0 // pred_check_branch
    %84 = sbr.rel (%p82) target = $region58
  $region57: #{pair_bert_embeddings_forward.2} parent=0 // pred_region
    %s85 = ssub.s32 1, %s31
    %s86 = smul.u32 %s85, 16
    %s87 = smul.u32 %s80, 16
    loop: start=0, step=1, limit=16
    $region59: #{pair_bert_embeddings_forward.2} parent=57 // loop_pre_header
      _
    $region60: #{pair_bert_embeddings_forward.2} parent=57 // loop_header
      %s89 = sphi 0, %s93
      %p90 = scmp.ge.s32.totalorder %s89, 16
    $region61: #{pair_bert_embeddings_forward.2} parent=57 // loop_header_branch
      %92 = sbr.rel (%p90) target = $region65
    $region62: #{pair_bert_embeddings_forward.2} parent=57 // loop_body
      %s94 = sadd.s32 %s87, %s89
      %s95 = sld [smem:[#allocation5 + %s94]]
      %s96 = sadd.s32 %s86, %s89
      %s97 = scalar_lea.vmem %s1, %s95
      %s98 = scalar_lea.vmem [#allocation2], %s96
      %s99 = scalar_lea.sflag [#allocation3], %s96
      // Predicated region
      $region66: #{pair_bert_embeddings_forward.2} parent=62 // pred_check
        _
      $region67: #{pair_bert_embeddings_forward.2} parent=62 // pred_check_branch
        %101 = sbr.rel target = $region69
      $region68: #{pair_bert_embeddings_forward.2} parent=62 // pred_region
        // Predicated region
        $region81: #{pair_bert_embeddings_forward.2} parent=68 // pred_check
          _
        $region82: #{pair_bert_embeddings_forward.2} parent=68 // pred_check_branch
          %117 = sbr.rel (0) target = $region84
        $region83: #{pair_bert_embeddings_forward.2} parent=68 // pred_region
          %s119 = ssub.s32 2, 1
          loop: start=0, step=1, limit=1
          $region85: #{pair_bert_embeddings_forward.2} parent=83 // loop_pre_header
            _
          $region86: #{pair_bert_embeddings_forward.2} parent=83 // loop_header
            %s121 = sphi 0, %s125
            %p122 = scmp.ge.s32.totalorder %s121, 1
            %s126 = sphi %s97, %s97
            %s127 = sphi %s98, %s98
          $region87: #{pair_bert_embeddings_forward.2} parent=83 // loop_header_branch
            %124 = sbr.rel (%p122) target = $region91
          $region88: #{pair_bert_embeddings_forward.2} parent=83 // loop_body
            %v128 = vld [vmem:[%s126] sm:%s119]
            %129 = vst [vmem:[%s127] sm:%s119] %v128
          $region89: #{pair_bert_embeddings_forward.2} parent=83 // loop_footer
            %s125 = sadd.s32 1, %s121
          $region90: #{pair_bert_embeddings_forward.2} parent=83 // loop_footer_branch
            %120 = sbr.rel target = $region86
          $region91: #{pair_bert_embeddings_forward.2} parent=83 // loop_exit
            _
        $region84: #{pair_bert_embeddings_forward.2} parent=68 // pred_fallthru
          _
      $region69: #{pair_bert_embeddings_forward.2} parent=62 // pred_fallthru
        _
      // Predicated region
      $region70: #{pair_bert_embeddings_forward.2} parent=62 // pred_check
        _
      $region71: #{pair_bert_embeddings_forward.2} parent=62 // pred_check_branch
        %103 = sbr.rel (0) target = $region73
      $region72: #{pair_bert_embeddings_forward.2} parent=62 // pred_region
        %s105 = ssub.s32 2, 1
        loop: start=0, step=1, limit=1
        $region74: #{pair_bert_embeddings_forward.2} parent=72 // loop_pre_header
          _
        $region75: #{pair_bert_embeddings_forward.2} parent=72 // loop_header
          %s107 = sphi 0, %s111
          %p108 = scmp.ge.s32.totalorder %s107, 1
          %s112 = sphi %s97, %s97
          %s113 = sphi %s98, %s98
        $region76: #{pair_bert_embeddings_forward.2} parent=72 // loop_header_branch
          %110 = sbr.rel (%p108) target = $region80
        $region77: #{pair_bert_embeddings_forward.2} parent=72 // loop_body
          %v114 = vld [vmem:[%s112] sm:%s105]
          %115 = vst [vmem:[%s113] sm:%s105] %v114
        $region78: #{pair_bert_embeddings_forward.2} parent=72 // loop_footer
          %s111 = sadd.s32 1, %s107
        $region79: #{pair_bert_embeddings_forward.2} parent=72 // loop_footer_branch
          %106 = sbr.rel target = $region75
        $region80: #{pair_bert_embeddings_forward.2} parent=72 // loop_exit
          _
      $region73: #{pair_bert_embeddings_forward.2} parent=62 // pred_fallthru
        _
      // Predicated region
      $region92: #{pair_bert_embeddings_forward.2} parent=62 // pred_check
        _
      $region93: #{pair_bert_embeddings_forward.2} parent=62 // pred_check_branch
        %132 = sbr.rel (0) target = $region95
      $region94: #{pair_bert_embeddings_forward.2} parent=62 // pred_region
        %133 = vsyncadd %s99, 16
      $region95: #{pair_bert_embeddings_forward.2} parent=62 // pred_fallthru
        _
    $region63: #{pair_bert_embeddings_forward.2} parent=57 // loop_footer
      %s93 = sadd.s32 1, %s89
    $region64: #{pair_bert_embeddings_forward.2} parent=57 // loop_footer_branch
      %88 = sbr.rel target = $region60
    $region65: #{pair_bert_embeddings_forward.2} parent=57 // loop_exit
      _
  $region58: #{pair_bert_embeddings_forward.2} parent=0 // pred_fallthru
    _
  loop: start=0, step=1, limit=16
  $region96: #{pair_bert_embeddings_forward.2} parent=0 // loop_pre_header
    _
  $region97: #{pair_bert_embeddings_forward.2} parent=0 // loop_header
    %s135 = sphi 0, %s139
    %p136 = scmp.ge.s32.totalorder %s135, 16
  $region98: #{pair_bert_embeddings_forward.2} parent=0 // loop_header_branch
    %138 = sbr.rel (%p136) target = $region102
  $region99: #{pair_bert_embeddings_forward.2} parent=0 // loop_body
    %s140 = smul.u32 %s31, 16
    %s141 = sadd.s32 %s140, %s135
    %s142 = scalar_lea.sflag [#allocation3], %s141
    %s143 = smul.u32 1, 1
    %s144 = sshll.u32 %s143, 4
    %145 = dma.done %s142, %s144
  $region100: #{pair_bert_embeddings_forward.2} parent=0 // loop_footer
    %s139 = sadd.s32 1, %s135
  $region101: #{pair_bert_embeddings_forward.2} parent=0 // loop_footer_branch
    %134 = sbr.rel target = $region97
  $region102: #{pair_bert_embeddings_forward.2} parent=0 // loop_exit
    _
  %s146 = smul.u32 %s31, 16
  %s147 = scalar_lea.vmem [#allocation2], %s146
  %v148 = vld [vmem:[%s147] sm:$0xff]
  %v149 = vld [vmem:[%s147 + $0x8] sm:$0xff]
  %v150 = vld [vmem:[%s2] sm:$0xff]
  %v151 = vld [vmem:[%s2 + $0x8] sm:$0xff]
  %v152 = vadd.f32 %v148, %v150
  %v153 = vadd.f32 %v149, %v151
  %v154 = vld [vmem:[%s3] sm:$0x1]
  %v155 = vld [vmem:[%s4] sm:$0x1]
  %vm156 = vcmask 261120
  %v157 = vsel %vm156, %v152, 0.0
  %158 = vadd.xlane.f32.xlu0 %v157
  %v159 = vpop.xlane.xlu0 %158
  %v160 = vsel %vm156, %v153, 0.0
  %161 = vadd.xlane.f32.xlu0 %v160
  %v162 = vpop.xlane.xlu0 %161
  %v163 = vmul.f32 %v152, %v152
  %v164 = vmul.f32 %v153, %v153
  %v165 = vsel %vm156, %v163, 0.0
  %166 = vadd.xlane.f32.xlu0 %v165
  %v167 = vpop.xlane.xlu0 %166
  %v168 = vsel %vm156, %v164, 0.0
  %169 = vadd.xlane.f32.xlu0 %v168
  %v170 = vpop.xlane.xlu0 %169
  %v171 = vmul.f32 %v159, 0.03125
  %v172 = vmul.f32 %v162, 0.03125
  %v173 = vmul.f32 %v167, 0.03125
  %v174 = vmul.f32 %v170, 0.03125
  %v175 = vmul.f32 %v171, %v171
  %v176 = vmul.f32 %v172, %v172
  %v177 = vsub.f32 %v173, %v175
  %v178 = vsub.f32 %v174, %v176
  %v179 = vmax.f32 %v177, 0.0
  %v180 = vmax.f32 %v178, 0.0
  %v181 = vsub.f32 %v152, %v171
  %v182 = vsub.f32 %v153, %v172
  %v183 = vadd.f32 %v179, 1e-12
  %v184 = vadd.f32 %v180, 1e-12
  %v185 = vrsqrt.pop %v183
  %v186 = vmul.f32 %v185, %v183
  %v187 = vmul.f32 %v186, %v185
  %v188 = vmul.f32 0.5, %v187
  %v189 = vsub.f32 1.5, %v188
  %v190 = vmul.f32 %v185, %v189
  %vm191 = vweird.f32 %v183
  %vm192 = vweird.f32 %v185
  %vm193 = vmor %vm191, %vm192
  %v194 = vsel %vm193, %v185, %v190
  %v195 = vrsqrt.pop %v184
  %v196 = vmul.f32 %v195, %v184
  %v197 = vmul.f32 %v196, %v195
  %v198 = vmul.f32 0.5, %v197
  %v199 = vsub.f32 1.5, %v198
  %v200 = vmul.f32 %v195, %v199
  %vm201 = vweird.f32 %v184
  %vm202 = vweird.f32 %v195
  %vm203 = vmor %vm201, %vm202
  %v204 = vsel %vm203, %v195, %v200
  %v205 = vmul.f32 %v181, %v194
  %v206 = vmul.f32 %v182, %v204
  %v208 = vperm.slane %v154, 0
  %v210 = vmul.f32 %v205, %v208
  %v211 = vmul.f32 %v206, %v208
  %v213 = vperm.slane %v155, 0
  %v215 = vadd.f32 %v210, %v213
  %v216 = vadd.f32 %v211, %v213
  %217 = vst.msk [vmem:[%s5] sm:$0xff] %vm156, %v215
  %218 = vst.msk [vmem:[%s5 + $0x8] sm:$0xff] %vm156, %v216
  // Predicated region
  $region103: #{pair_bert_embeddings_forward.2} parent=0 // pred_check
    _
  $region104: #{pair_bert_embeddings_forward.2} parent=0 // pred_check_branch
    %220 = sbr.rel (0) target = $region106
  $region105: #{pair_bert_embeddings_forward.2} parent=0 // pred_region
    _
  $region106: #{pair_bert_embeddings_forward.2} parent=0 // pred_fallthru
    _
  // Predicated region
  $region107: #{pair_bert_embeddings_forward.2} parent=0 // pred_check
    _
  $region108: #{pair_bert_embeddings_forward.2} parent=0 // pred_check_branch
    %222 = sbr.rel (0) target = $region110
  $region109: #{pair_bert_embeddings_forward.2} parent=0 // pred_region
    _
  $region110: #{pair_bert_embeddings_forward.2} parent=0 // pred_fallthru
    _
  %223 = vsyncmov [#allocation3]
  %s224 = vpop.sfrf %223
  %p225 = scmp.eq.s32.totalorder %s224, 0
  %p226 = pneg %p225
  %228 = shalt.err (%p226)
  %s229 = scalar_lea.sflag [#allocation3], 1
  %230 = vsyncmov %s229
  %s231 = vpop.sfrf %230
  %p232 = scmp.eq.s32.totalorder %s231, 0
  %p233 = pneg %p232
  %235 = shalt.err (%p233)
  %s236 = scalar_lea.sflag [#allocation3], 2
  %237 = vsyncmov %s236
  %s238 = vpop.sfrf %237
  %p239 = scmp.eq.s32.totalorder %s238, 0
  %p240 = pneg %p239
  %242 = shalt.err (%p240)
  %s243 = scalar_lea.sflag [#allocation3], 3
  %244 = vsyncmov %s243
  %s245 = vpop.sfrf %244
  %p246 = scmp.eq.s32.totalorder %s245, 0
  %p247 = pneg %p246
  %249 = shalt.err (%p247)
  %s250 = scalar_lea.sflag [#allocation3], 4
  %251 = vsyncmov %s250
  %s252 = vpop.sfrf %251
  %p253 = scmp.eq.s32.totalorder %s252, 0
  %p254 = pneg %p253
  %256 = shalt.err (%p254)
  %s257 = scalar_lea.sflag [#allocation3], 5
  %258 = vsyncmov %s257
  %s259 = vpop.sfrf %258
  %p260 = scmp.eq.s32.totalorder %s259, 0
  %p261 = pneg %p260
  %263 = shalt.err (%p261)
  %s264 = scalar_lea.sflag [#allocation3], 6
  %265 = vsyncmov %s264
  %s266 = vpop.sfrf %265
  %p267 = scmp.eq.s32.totalorder %s266, 0
  %p268 = pneg %p267
  %270 = shalt.err (%p268)
  %s271 = scalar_lea.sflag [#allocation3], 7
  %272 = vsyncmov %s271
  %s273 = vpop.sfrf %272
  %p274 = scmp.eq.s32.totalorder %s273, 0
  %p275 = pneg %p274
  %277 = shalt.err (%p275)
  %s278 = scalar_lea.sflag [#allocation3], 8
  %279 = vsyncmov %s278
  %s280 = vpop.sfrf %279
  %p281 = scmp.eq.s32.totalorder %s280, 0
  %p282 = pneg %p281
  %284 = shalt.err (%p282)
  %s285 = scalar_lea.sflag [#allocation3], 9
  %286 = vsyncmov %s285
  %s287 = vpop.sfrf %286
  %p288 = scmp.eq.s32.totalorder %s287, 0
  %p289 = pneg %p288
  %291 = shalt.err (%p289)
  %s292 = scalar_lea.sflag [#allocation3], 10
  %293 = vsyncmov %s292
  %s294 = vpop.sfrf %293
  %p295 = scmp.eq.s32.totalorder %s294, 0
  %p296 = pneg %p295
  %298 = shalt.err (%p296)
  %s299 = scalar_lea.sflag [#allocation3], 11
  %300 = vsyncmov %s299
  %s301 = vpop.sfrf %300
  %p302 = scmp.eq.s32.totalorder %s301, 0
  %p303 = pneg %p302
  %305 = shalt.err (%p303)
  %s306 = scalar_lea.sflag [#allocation3], 12
  %307 = vsyncmov %s306
  %s308 = vpop.sfrf %307
  %p309 = scmp.eq.s32.totalorder %s308, 0
  %p310 = pneg %p309
  %312 = shalt.err (%p310)
  %s313 = scalar_lea.sflag [#allocation3], 13
  %314 = vsyncmov %s313
  %s315 = vpop.sfrf %314
  %p316 = scmp.eq.s32.totalorder %s315, 0
  %p317 = pneg %p316
  %319 = shalt.err (%p317)
  %s320 = scalar_lea.sflag [#allocation3], 14
  %321 = vsyncmov %s320
  %s322 = vpop.sfrf %321
  %p323 = scmp.eq.s32.totalorder %s322, 0
  %p324 = pneg %p323
  %326 = shalt.err (%p324)
  %s327 = scalar_lea.sflag [#allocation3], 15
  %328 = vsyncmov %s327
  %s329 = vpop.sfrf %328
  %p330 = scmp.eq.s32.totalorder %s329, 0
  %p331 = pneg %p330
  %333 = shalt.err (%p331)
  %s334 = scalar_lea.sflag [#allocation3], 16
  %335 = vsyncmov %s334
  %s336 = vpop.sfrf %335
  %p337 = scmp.eq.s32.totalorder %s336, 0
  %p338 = pneg %p337
  %340 = shalt.err (%p338)
  %s341 = scalar_lea.sflag [#allocation3], 17
  %342 = vsyncmov %s341
  %s343 = vpop.sfrf %342
  %p344 = scmp.eq.s32.totalorder %s343, 0
  %p345 = pneg %p344
  %347 = shalt.err (%p345)
  %s348 = scalar_lea.sflag [#allocation3], 18
  %349 = vsyncmov %s348
  %s350 = vpop.sfrf %349
  %p351 = scmp.eq.s32.totalorder %s350, 0
  %p352 = pneg %p351
  %354 = shalt.err (%p352)
  %s355 = scalar_lea.sflag [#allocation3], 19
  %356 = vsyncmov %s355
  %s357 = vpop.sfrf %356
  %p358 = scmp.eq.s32.totalorder %s357, 0
  %p359 = pneg %p358
  %361 = shalt.err (%p359)
  %s362 = scalar_lea.sflag [#allocation3], 20
  %363 = vsyncmov %s362
  %s364 = vpop.sfrf %363
  %p365 = scmp.eq.s32.totalorder %s364, 0
  %p366 = pneg %p365
  %368 = shalt.err (%p366)
  %s369 = scalar_lea.sflag [#allocation3], 21
  %370 = vsyncmov %s369
  %s371 = vpop.sfrf %370
  %p372 = scmp.eq.s32.totalorder %s371, 0
  %p373 = pneg %p372
  %375 = shalt.err (%p373)
  %s376 = scalar_lea.sflag [#allocation3], 22
  %377 = vsyncmov %s376
  %s378 = vpop.sfrf %377
  %p379 = scmp.eq.s32.totalorder %s378, 0
  %p380 = pneg %p379
  %382 = shalt.err (%p380)
  %s383 = scalar_lea.sflag [#allocation3], 23
  %384 = vsyncmov %s383
  %s385 = vpop.sfrf %384
  %p386 = scmp.eq.s32.totalorder %s385, 0
  %p387 = pneg %p386
  %389 = shalt.err (%p387)
  %s390 = scalar_lea.sflag [#allocation3], 24
  %391 = vsyncmov %s390
  %s392 = vpop.sfrf %391
  %p393 = scmp.eq.s32.totalorder %s392, 0
  %p394 = pneg %p393
  %396 = shalt.err (%p394)
  %s397 = scalar_lea.sflag [#allocation3], 25
  %398 = vsyncmov %s397
  %s399 = vpop.sfrf %398
  %p400 = scmp.eq.s32.totalorder %s399, 0
  %p401 = pneg %p400
  %403 = shalt.err (%p401)
  %s404 = scalar_lea.sflag [#allocation3], 26
  %405 = vsyncmov %s404
  %s406 = vpop.sfrf %405
  %p407 = scmp.eq.s32.totalorder %s406, 0
  %p408 = pneg %p407
  %410 = shalt.err (%p408)
  %s411 = scalar_lea.sflag [#allocation3], 27
  %412 = vsyncmov %s411
  %s413 = vpop.sfrf %412
  %p414 = scmp.eq.s32.totalorder %s413, 0
  %p415 = pneg %p414
  %417 = shalt.err (%p415)
  %s418 = scalar_lea.sflag [#allocation3], 28
  %419 = vsyncmov %s418
  %s420 = vpop.sfrf %419
  %p421 = scmp.eq.s32.totalorder %s420, 0
  %p422 = pneg %p421
  %424 = shalt.err (%p422)
  %s425 = scalar_lea.sflag [#allocation3], 29
  %426 = vsyncmov %s425
  %s427 = vpop.sfrf %426
  %p428 = scmp.eq.s32.totalorder %s427, 0
  %p429 = pneg %p428
  %431 = shalt.err (%p429)
  %s432 = scalar_lea.sflag [#allocation3], 30
  %433 = vsyncmov %s432
  %s434 = vpop.sfrf %433
  %p435 = scmp.eq.s32.totalorder %s434, 0
  %p436 = pneg %p435
  %438 = shalt.err (%p436)
  %s439 = scalar_lea.sflag [#allocation3], 31
  %440 = vsyncmov %s439
  %s441 = vpop.sfrf %440
  %p442 = scmp.eq.s32.totalorder %s441, 0
  %p443 = pneg %p442
  %445 = shalt.err (%p443)

// kernel: pair_bert_embeddings_forward.3
$region0: #{pair_bert_embeddings_forward.3}
  #allocation0 [shape = 'u32[]', space=smem, size = 0x4, offset = 0x4, fixed_abs, tag = 'smem constant byte address 0x4 - core index']
  #allocation1 [shape = 'u32[72,128]{1,0:T(1,128)}', space=vmem, size = 0x9000, scoped, tag = 'internal scratch']
  %s0 = inlined_call_operand.vmem [shape: f32[8,16], index: 0, kind: input, shape index: {}]
  %s1 = inlined_call_operand.vmem [shape: f32[16,32], index: 1, kind: input, shape index: {}]
  %s2 = inlined_call_operand.vmem [shape: f32[1,32], index: 2, kind: input, shape index: {}, may-alias: {2,5}]
  %s3 = inlined_call_operand.vmem [shape: f32[8,32], index: 3, kind: input, shape index: {}]
  %s4 = inlined_call_operand.vmem [shape: f32[1,32], index: 4, kind: input, shape index: {}]
  %s5 = inlined_call_operand.vmem [shape: f32[1,32], index: 5, kind: input, shape index: {}, may-alias: {2,5}]
  %s6 = inlined_call_operand.vmem [shape: f32[8,32], index: 6, kind: output, shape index: {}]
  %s7 = sld [smem:[#allocation0]]
  $region34: #{pair_bert_embeddings_forward.3} parent=0
    _
  %s9 = ssub.s32 1, %s7
  %s10 = scalar_select 0, %s9, %s7
  // Predicated region
  $region2: #{pair_bert_embeddings_forward.3} parent=0 // pred_check
    _
  $region3: #{pair_bert_embeddings_forward.3} parent=0 // pred_check_branch
    %12 = sbr.rel (0) target = $region5
  $region4: #{pair_bert_embeddings_forward.3} parent=0 // pred_region
    _
  $region5: #{pair_bert_embeddings_forward.3} parent=0 // pred_fallthru
    _
  // Predicated region
  $region6: #{pair_bert_embeddings_forward.3} parent=0 // pred_check
    _
  $region7: #{pair_bert_embeddings_forward.3} parent=0 // pred_check_branch
    %14 = sbr.rel (0) target = $region9
  $region8: #{pair_bert_embeddings_forward.3} parent=0 // pred_region
    _
  $region9: #{pair_bert_embeddings_forward.3} parent=0 // pred_fallthru
    _
  // Predicated region
  $region10: #{pair_bert_embeddings_forward.3} parent=0 // pred_check
    _
  $region11: #{pair_bert_embeddings_forward.3} parent=0 // pred_check_branch
    %16 = sbr.rel (0) target = $region13
  $region12: #{pair_bert_embeddings_forward.3} parent=0 // pred_region
    _
  $region13: #{pair_bert_embeddings_forward.3} parent=0 // pred_fallthru
    _
  // Predicated region
  $region14: #{pair_bert_embeddings_forward.3} parent=0 // pred_check
    _
  $region15: #{pair_bert_embeddings_forward.3} parent=0 // pred_check_branch
    %18 = sbr.rel (0) target = $region17
  $region16: #{pair_bert_embeddings_forward.3} parent=0 // pred_region
    _
  $region17: #{pair_bert_embeddings_forward.3} parent=0 // pred_fallthru
    _
  // Predicated region
  $region18: #{pair_bert_embeddings_forward.3} parent=0 // pred_check
    _
  $region19: #{pair_bert_embeddings_forward.3} parent=0 // pred_check_branch
    %20 = sbr.rel (0) target = $region21
  $region20: #{pair_bert_embeddings_forward.3} parent=0 // pred_region
    _
  $region21: #{pair_bert_embeddings_forward.3} parent=0 // pred_fallthru
    _
  // Predicated region
  $region22: #{pair_bert_embeddings_forward.3} parent=0 // pred_check
    _
  $region23: #{pair_bert_embeddings_forward.3} parent=0 // pred_check_branch
    %22 = sbr.rel (0) target = $region25
  $region24: #{pair_bert_embeddings_forward.3} parent=0 // pred_region
    _
  $region25: #{pair_bert_embeddings_forward.3} parent=0 // pred_fallthru
    _
  %v23 = vld [vmem:[%s0] sm:$0xff]
  %v24 = vld [vmem:[%s1] sm:$0xff]
  %v25 = vld [vmem:[%s1 + $0x8] sm:$0xff]
  %v26 = vld [vmem:[%s2] sm:$0x1]
  %v28 = vperm.slane %v26, 0
  %vm30 = vcmask 130048
  %v32 = vsel %vm30, %v23, 0
  %34 = vmatpush.msra.mxu0 0.0
  %35 = vmatpush.msra.mxu0 0.0
  %36 = vmatpush.msra.mxu0 0.0
  %37 = vmatpush.msra.mxu0 0.0
  %38 = vmatpush.msra.mxu0 0.0
  %39 = vmatpush.msra.mxu0 0.0
  %40 = vmatpush.msra.mxu0 0.0
  %41 = vmatpush.msra.mxu0 0.0
  %42 = vmatpush.msra.mxu0 0.0
  %43 = vmatpush.msra.mxu0 0.0
  %44 = vmatpush.msra.mxu0 0.0
  %45 = vmatpush.msra.mxu0 0.0
  %46 = vmatpush.msra.mxu0 0.0
  %47 = vmatpush.msra.mxu0 0.0
  %48 = vmatpush.msra.mxu0 %v25
  %49 = vmatpush.msra.mxu0 %v24
  %50 = vmatmul.f32.gmra.mxu0 %v32
  %v51 = vpop.f32.mrf.mxu0
  %v52 = vadd.f32 %v28, %v51
  %53 = vdwg.mxu0
  %v54 = vld [vmem:[%s3] sm:$0xff]
  %v55 = vadd.f32 %v52, %v54
  %v56 = vld [vmem:[%s4] sm:$0x1]
  %v57 = vld [vmem:[%s5] sm:$0x1]
  %vm58 = vcmask 261120
  %v59 = vsel %vm58, %v55, 0.0
  %60 = vadd.xlane.f32.xlu0 %v59
  %v61 = vpop.xlane.xlu0 %60
  %v62 = vmul.f32 %v55, %v55
  %v63 = vsel %vm58, %v62, 0.0
  %64 = vadd.xlane.f32.xlu0 %v63
  %v65 = vpop.xlane.xlu0 %64
  %v66 = vmul.f32 %v61, 0.03125
  %v67 = vmul.f32 %v65, 0.03125
  %v68 = vmul.f32 %v66, %v66
  %v69 = vsub.f32 %v67, %v68
  %v70 = vmax.f32 %v69, 0.0
  %v71 = vsub.f32 %v55, %v66
  %v72 = vadd.f32 %v70, 1e-12
  %v73 = vrsqrt.pop %v72
  %v74 = vmul.f32 %v73, %v72
  %v75 = vmul.f32 %v74, %v73
  %v76 = vmul.f32 0.5, %v75
  %v77 = vsub.f32 1.5, %v76
  %v78 = vmul.f32 %v73, %v77
  %vm79 = vweird.f32 %v72
  %vm80 = vweird.f32 %v73
  %vm81 = vmor %vm79, %vm80
  %v82 = vsel %vm81, %v73, %v78
  %v83 = vmul.f32 %v71, %v82
  %v85 = vperm.slane %v56, 0
  %v87 = vmul.f32 %v83, %v85
  %v89 = vperm.slane %v57, 0
  %v91 = vadd.f32 %v87, %v89
  %92 = vst.msk [vmem:[%s6] sm:$0xff] %vm58, %v91
  // Predicated region
  $region26: #{pair_bert_embeddings_forward.3} parent=0 // pred_check
    _
  $region27: #{pair_bert_embeddings_forward.3} parent=0 // pred_check_branch
    %94 = sbr.rel (0) target = $region29
  $region28: #{pair_bert_embeddings_forward.3} parent=0 // pred_region
    _
  $region29: #{pair_bert_embeddings_forward.3} parent=0 // pred_fallthru
    _
  // Predicated region
  $region30: #{pair_bert_embeddings_forward.3} parent=0 // pred_check
    _
  $region31: #{pair_bert_embeddings_forward.3} parent=0 // pred_check_branch
    %96 = sbr.rel (0) target = $region33
  $region32: #{pair_bert_embeddings_forward.3} parent=0 // pred_region
    _
  $region33: #{pair_bert_embeddings_forward.3} parent=0 // pred_fallthru
    _

</llo_original>
